<compile_context>
chip_gen: v7x
topology: tpu7x:2x2x1
jax: 0.10.0
libtpu: 0.0.40
codegen_flags: <defaults>
</compile_context>

<pallas_src>
import jax
import jax.numpy as jnp
from jax import lax
from jax.experimental import pallas as pl
from jax.experimental.pallas import tpu as pltpu

INV_T = 5.0  # 1 / T, T = 0.2 (SimCLR temperature)


# ----------------------------------------------------------------------------
# Fused kernel: proj_head on both views + SimCLR loss
# ----------------------------------------------------------------------------
def mask_simclr_kernel(x_ref, xa_ref, wt_ref, b_ref, z_ref, loss_ref):
    """x_ref/xa_ref : [B, D] f32     view / augmented-view embeddings
       wt_ref       : [2, D, D] bf16 pre-transposed ([in, out]) Linear weights
       b_ref        : [2, D] f32     biases
       z_ref        : [B, 2D] f32    lane-dense slab: z in [:, :D], z_aug in [:, D:]
       loss_ref     : [1] f32 SMEM   SimCLR loss
    """
    B, D = x_ref.shape

    # Row-stack the two views -> a single MXU pass per Linear.
    x2 = jnp.concatenate([x_ref[...], xa_ref[...]], axis=0).astype(jnp.bfloat16)

    # proj_head: Linear -> ReLU -> Linear (bf16 operands, f32 MXU accumulation).
    h = jnp.dot(x2, wt_ref[0], preferred_element_type=jnp.float32) + b_ref[0:1, :]
    h = jnp.maximum(h, 0.0)
    z2 = jnp.dot(h.astype(jnp.bfloat16), wt_ref[1],
                 preferred_element_type=jnp.float32) + b_ref[1:2, :]

    z, za = z2[:B], z2[B:]

    # Lane-dense output slab: [B, 2D] (== [8,128] here) -> one unmasked store,
    # one output DMA.
    z_ref[...] = jnp.concatenate([z, za], axis=1).astype(z_ref.dtype)

    # ---- SimCLR loss (f32 elementwise; z / z_aug never leave vregs) ----------
    # Row-normalize with rsqrt (EUP) and fold 1/T into one side, so the [B, B]
    # similarity needs no post-matmul divide or temperature rescale.
    zn = z * (lax.rsqrt(jnp.sum(z * z, axis=1, keepdims=True)) * INV_T)
    zan = za * lax.rsqrt(jnp.sum(za * za, axis=1, keepdims=True))

    # einsum 'ik,jk->ij': contract the LAST dim of both operands -> no transpose.
    sim = lax.dot_general(zn.astype(jnp.bfloat16), zan.astype(jnp.bfloat16),
                          (((1,), (1,)), ((), ())),
                          preferred_element_type=jnp.float32)        # [B, B] logits

    # Positive taken from the SAME sim matrix; diagonal masked out of the
    # denominator instead of subtracting exp(pos), so mixed bf16/f32 precision
    # can never drive (row_sum - pos) <= 0 -> NaN.  |logits| <= INV_T = 5, so
    # exp() cannot overflow at this temperature (add a max-subtraction if T
    # ever becomes much smaller).
    rows = lax.broadcasted_iota(jnp.int32, (B, B), 0)
    cols = lax.broadcasted_iota(jnp.int32, (B, B), 1)
    diag = rows == cols
    pos_logit = jnp.sum(jnp.where(diag, sim, 0.0), axis=1, keepdims=True)         # [B,1]
    off_sum = jnp.sum(jnp.where(diag, 0.0, jnp.exp(sim)), axis=1, keepdims=True)  # [B,1]

    # loss_i = -log(pos / off_sum) = log(off_sum) - pos_logit
    loss_vec = jnp.log(off_sum) - pos_logit
    loss_ref[0] = jnp.sum(loss_vec) * (1.0 / B)


# ----------------------------------------------------------------------------
# Wrappers
# ----------------------------------------------------------------------------
def prepare_params(w1, b1, w2, b2):
    """One-time parameter prep (outside the kernel): PyTorch Linear stores W as
    [out, in]; pre-transpose to [in, out], cast to bf16, and stack both layers
    so the kernel DMAs 2 parameter buffers instead of 4."""
    wt = jnp.stack([jnp.asarray(w1).T, jnp.asarray(w2).T]).astype(jnp.bfloat16)  # [2, D, D]
    bstk = jnp.stack([jnp.asarray(b1), jnp.asarray(b2)]).astype(jnp.float32)     # [2, D]
    return wt, bstk


def mask_simclr_forward(x_embed, x_embed_aug, wt, bstk):
    """proj_head(x), proj_head(x_aug) and simclr_loss fused into ONE pallas_call.

    Returns (z, z_aug, loss) where z == module.forward() applied to each view.

    Notes on scaling (per review): at these tiny shapes the call is launch/DMA
    overhead bound and a gridless whole-block VMEM kernel is optimal. If many
    (x, x_aug) pairs are evaluated per training step, stack them on a leading
    axis and add a grid with dimension_semantics=("parallel",) to amortize the
    fixed cost (and engage both TensorCores on v7x). For large embedding_dim,
    tile K/N of the weights (>=512 wide), cap each double-buffered tile at
    ~8-16 MiB, and set pltpu.CompilerParams(vmem_limit_bytes=...) explicitly
    (v7x has 64 MiB VMEM vs 128 MiB on v5e/v6e; v5e's default scoped limit is
    only 16 MiB).
    """
    B, D = x_embed.shape
    z_slab, loss = pl.pallas_call(
        mask_simclr_kernel,
        out_shape=(jax.ShapeDtypeStruct((B, 2 * D), x_embed.dtype),
                   jax.ShapeDtypeStruct((1,), jnp.float32)),
        in_specs=[pl.BlockSpec(memory_space=pltpu.VMEM)] * 4,
        out_specs=(pl.BlockSpec(memory_space=pltpu.VMEM),
                   pl.BlockSpec(memory_space=pltpu.SMEM)),
    )(x_embed, x_embed_aug, wt, bstk)
    return z_slab[:, :D], z_slab[:, D:], loss[0]


# ----------------------------------------------------------------------------
# Parameter init (mimics nn.Linear default uniform init)
# ----------------------------------------------------------------------------
def init_proj_head_params(key, embedding_dim):
    k1, k2, k3, k4 = jax.random.split(key, 4)
    bound = 1.0 / jnp.sqrt(embedding_dim)
    w1 = jax.random.uniform(k1, (embedding_dim, embedding_dim), jnp.float32, -bound, bound)
    b1 = jax.random.uniform(k2, (embedding_dim,), jnp.float32, -bound, bound)
    w2 = jax.random.uniform(k3, (embedding_dim, embedding_dim), jnp.float32, -bound, bound)
    b2 = jax.random.uniform(k4, (embedding_dim,), jnp.float32, -bound, bound)
    return w1, b1, w2, b2


if __name__ == "__main__":
    # Shapes consistent with the module: max_dim=2, emb_dim=32 ->
    # embedding_dim = 64, batch = 8.
    batch = 8
    max_dim = 2
    emb_dim = 32
    embedding_dim = max_dim * emb_dim

    key = jax.random.PRNGKey(0)
    k_x, k_xaug, k_params = jax.random.split(key, 3)

    # TODO(synk): the CIN/SparseCIN/CINpp cell-complex encoder (sparse graph
    # message passing over cochains) has no clean dense Pallas equivalent; the
    # kernel consumes its embedding x: [batch, max_dim * emb_dim].
    x_embed = jax.random.normal(k_x, (batch, embedding_dim), jnp.float32)
    x_embed_aug = jax.random.normal(k_xaug, (batch, embedding_dim), jnp.float32)

    w1, b1, w2, b2 = init_proj_head_params(k_params, embedding_dim)
    wt, bstk = prepare_params(w1, b1, w2, b2)   # done once, reused per call

    fwd = jax.jit(mask_simclr_forward)
    z, z_aug, loss = fwd(x_embed, x_embed_aug, wt, bstk)
    jax.block_until_ready((z, z_aug, loss))

    # --- check 1: exact-semantics reference (same bf16-operand / f32-accum math) ---
    w1t_mp, w2t_mp = wt[0], wt[1]
    b1_mp, b2_mp = bstk[0:1, :], bstk[1:2, :]

    def proj_mp(v):
        hh = jnp.dot(v.astype(jnp.bfloat16), w1t_mp, preferred_element_type=jnp.float32) + b1_mp
        hh = jnp.maximum(hh, 0.0)
        return jnp.dot(hh.astype(jnp.bfloat16), w2t_mp, preferred_element_type=jnp.float32) + b2_mp

    def loss_mp_fn(a, c):
        an = a * (lax.rsqrt(jnp.sum(a * a, axis=1, keepdims=True)) * INV_T)
        cn = c * lax.rsqrt(jnp.sum(c * c, axis=1, keepdims=True))
        s = lax.dot_general(an.astype(jnp.bfloat16), cn.astype(jnp.bfloat16),
                            (((1,), (1,)), ((), ())),
                            preferred_element_type=jnp.float32)
        eye = jnp.eye(a.shape[0], dtype=bool)
        pos_logit = jnp.sum(jnp.where(eye, s, 0.0), axis=1)
        off_sum = jnp.sum(jnp.where(eye, 0.0, jnp.exp(s)), axis=1)
        return jnp.mean(jnp.log(off_sum) - pos_logit)

    z_mp, za_mp = proj_mp(x_embed), proj_mp(x_embed_aug)
    loss_mp = loss_mp_fn(z_mp, za_mp)
    assert jnp.allclose(z, z_mp, atol=5e-3, rtol=5e-3)
    assert jnp.allclose(z_aug, za_mp, atol=5e-3, rtol=5e-3)
    assert jnp.allclose(loss, loss_mp, atol=5e-3, rtol=5e-3)

    # --- check 2: PyTorch-parity float32 reference (bf16 mixed-precision tolerance) ---
    def proj_f32(v):
        return jnp.maximum(v @ w1.T + b1, 0.0) @ w2.T + b2

    def loss_f32(a, c):
        T = 0.2
        an = jnp.linalg.norm(a, axis=1)
        cn = jnp.linalg.norm(c, axis=1)
        sm = jnp.exp((a @ c.T) / (an[:, None] * cn[None, :]) / T)
        pos = jnp.diag(sm)
        return -jnp.log(pos / (sm.sum(axis=1) - pos)).mean()

    z_ref, za_ref = proj_f32(x_embed), proj_f32(x_embed_aug)
    loss_ref = loss_f32(z_ref, za_ref)
    assert jnp.allclose(z, z_ref, atol=5e-2, rtol=5e-2)
    assert jnp.allclose(z_aug, za_ref, atol=5e-2, rtol=5e-2)
    assert jnp.allclose(loss, loss_ref, atol=1e-1, rtol=1e-1)

    print("KERNEL_OK")
</pallas_src>

<mosaic_0001>
module attributes {stable_mosaic.version = 11 : i64} {
  func.func @mask_simclr_kernel(%arg0: memref<8x64xf32, #tpu.memory_space<vmem>>, %arg1: memref<8x64xf32, #tpu.memory_space<vmem>>, %arg2: memref<2x64x64xbf16, #tpu.memory_space<vmem>>, %arg3: memref<2x64xf32, #tpu.memory_space<vmem>>, %arg4: memref<8x128xf32, #tpu.memory_space<vmem>>, %arg5: memref<1xf32, #tpu.memory_space<smem>>) attributes {dimension_semantics = [], scalar_prefetch = 0 : i64, scratch_operands = 0 : i64, tpu.core_type = #tpu.core_type<tc>} {
    %c0 = arith.constant 0 : index
    %c0_0 = arith.constant 0 : index
    %0 = vector.load %arg0[%c0, %c0_0] : memref<8x64xf32, #tpu.memory_space<vmem>>, vector<8x64xf32>
    %c0_1 = arith.constant 0 : index
    %c0_2 = arith.constant 0 : index
    %1 = vector.load %arg1[%c0_1, %c0_2] : memref<8x64xf32, #tpu.memory_space<vmem>>, vector<8x64xf32>
    %2 = tpu.concatenate %0, %1 in 0 : vector<8x64xf32>, vector<8x64xf32> -> vector<16x64xf32>
    %3 = arith.truncf %2 : vector<16x64xf32> to vector<16x64xbf16>
    %c0_3 = arith.constant 0 : index
    %c0_4 = arith.constant 0 : index
    %c0_5 = arith.constant 0 : index
    %4 = vector.load %arg2[%c0_3, %c0_4, %c0_5] : memref<2x64x64xbf16, #tpu.memory_space<vmem>>, vector<1x64x64xbf16>
    %5 = vector.shape_cast %4 : vector<1x64x64xbf16> to vector<64x64xbf16>
    %cst = arith.constant dense<0.000000e+00> : vector<16x64xf32>
    %6 = tpu.matmul %3, %5, %cst {dimension_numbers = #tpu.dot_dimension_numbers<[1], [0], [0], [1], [0, 0, 1, 1], [], []>} : vector<16x64xbf16>, vector<64x64xbf16>, vector<16x64xf32> -> vector<16x64xf32>
    %c0_6 = arith.constant 0 : index
    %c0_7 = arith.constant 0 : index
    %7 = vector.load %arg3[%c0_6, %c0_7] : memref<2x64xf32, #tpu.memory_space<vmem>>, vector<1x64xf32>
    %8 = vector.broadcast %7 : vector<1x64xf32> to vector<16x64xf32>
    %9 = arith.addf %6, %8 : vector<16x64xf32>
    %cst_8 = arith.constant 0.000000e+00 : f32
    %10 = vector.broadcast %cst_8 : f32 to vector<16x64xf32>
    %11 = arith.maximumf %9, %10 : vector<16x64xf32>
    %12 = arith.truncf %11 : vector<16x64xf32> to vector<16x64xbf16>
    %c1 = arith.constant 1 : index
    %c0_9 = arith.constant 0 : index
    %c0_10 = arith.constant 0 : index
    %13 = vector.load %arg2[%c1, %c0_9, %c0_10] : memref<2x64x64xbf16, #tpu.memory_space<vmem>>, vector<1x64x64xbf16>
    %14 = vector.shape_cast %13 : vector<1x64x64xbf16> to vector<64x64xbf16>
    %cst_11 = arith.constant dense<0.000000e+00> : vector<16x64xf32>
    %15 = tpu.matmul %12, %14, %cst_11 {dimension_numbers = #tpu.dot_dimension_numbers<[1], [0], [0], [1], [0, 0, 1, 1], [], []>} : vector<16x64xbf16>, vector<64x64xbf16>, vector<16x64xf32> -> vector<16x64xf32>
    %c1_12 = arith.constant 1 : index
    %c0_13 = arith.constant 0 : index
    %16 = vector.load %arg3[%c1_12, %c0_13] : memref<2x64xf32, #tpu.memory_space<vmem>>, vector<1x64xf32>
    %17 = vector.broadcast %16 : vector<1x64xf32> to vector<16x64xf32>
    %18 = arith.addf %15, %17 : vector<16x64xf32>
    %19 = vector.extract_strided_slice %18 {offsets = [0, 0], sizes = [8, 64], strides = [1, 1]} : vector<16x64xf32> to vector<8x64xf32>
    %20 = vector.extract_strided_slice %18 {offsets = [8, 0], sizes = [8, 64], strides = [1, 1]} : vector<16x64xf32> to vector<8x64xf32>
    %21 = tpu.concatenate %19, %20 in 1 : vector<8x64xf32>, vector<8x64xf32> -> vector<8x128xf32>
    %c0_14 = arith.constant 0 : index
    %c0_15 = arith.constant 0 : index
    %22 = vector.load %arg4[%c0_14, %c0_15] : memref<8x128xf32, #tpu.memory_space<vmem>>, vector<8x128xf32>
    tpu.vector_store %arg4[%c0_14, %c0_15], %21 {strides = array<i32>} : memref<8x128xf32, #tpu.memory_space<vmem>>, vector<8x128xf32>,
    %23 = arith.mulf %19, %19 : vector<8x64xf32>
    %cst_16 = arith.constant dense<0.000000e+00> : vector<8xf32>
    %24 = vector.multi_reduction <add>, %23, %cst_16 [1] : vector<8x64xf32> to vector<8xf32>
    %25 = vector.shape_cast %24 : vector<8xf32> to vector<8x1xf32>
    %26 = math.rsqrt %25 : vector<8x1xf32>
    %cst_17 = arith.constant 5.000000e+00 : f32
    %27 = vector.broadcast %cst_17 : f32 to vector<8x1xf32>
    %28 = arith.mulf %26, %27 : vector<8x1xf32>
    %29 = vector.broadcast %28 : vector<8x1xf32> to vector<8x64xf32>
    %30 = arith.mulf %19, %29 : vector<8x64xf32>
    %31 = arith.mulf %20, %20 : vector<8x64xf32>
    %cst_18 = arith.constant dense<0.000000e+00> : vector<8xf32>
    %32 = vector.multi_reduction <add>, %31, %cst_18 [1] : vector<8x64xf32> to vector<8xf32>
    %33 = vector.shape_cast %32 : vector<8xf32> to vector<8x1xf32>
    %34 = math.rsqrt %33 : vector<8x1xf32>
    %35 = vector.broadcast %34 : vector<8x1xf32> to vector<8x64xf32>
    %36 = arith.mulf %20, %35 : vector<8x64xf32>
    %37 = arith.truncf %30 : vector<8x64xf32> to vector<8x64xbf16>
    %38 = arith.truncf %36 : vector<8x64xf32> to vector<8x64xbf16>
    %cst_19 = arith.constant dense<0.000000e+00> : vector<8x8xf32>
    %39 = tpu.matmul %37, %38, %cst_19 {dimension_numbers = #tpu.dot_dimension_numbers<[1], [1], [0], [0], [0, 0, 1, 0], [], []>} : vector<8x64xbf16>, vector<8x64xbf16>, vector<8x8xf32> -> vector<8x8xf32>
    %40 = tpu.iota {dimensions = array<i32: 0>} : vector<8x8xi32>
    %41 = tpu.iota {dimensions = array<i32: 1>} : vector<8x8xi32>
    %42 = arith.cmpi eq, %40, %41 : vector<8x8xi32>
    %cst_20 = arith.constant 0.000000e+00 : f32
    %43 = vector.broadcast %cst_20 : f32 to vector<8x8xf32>
    %44 = arith.select %42, %39, %43 : vector<8x8xi1>, vector<8x8xf32>
    %cst_21 = arith.constant dense<0.000000e+00> : vector<8xf32>
    %45 = vector.multi_reduction <add>, %44, %cst_21 [1] : vector<8x8xf32> to vector<8xf32>
    %46 = vector.shape_cast %45 : vector<8xf32> to vector<8x1xf32>
    %47 = math.exp %39 : vector<8x8xf32>
    %cst_22 = arith.constant 0.000000e+00 : f32
    %48 = vector.broadcast %cst_22 : f32 to vector<8x8xf32>
    %49 = arith.select %42, %48, %47 : vector<8x8xi1>, vector<8x8xf32>
    %cst_23 = arith.constant dense<0.000000e+00> : vector<8xf32>
    %50 = vector.multi_reduction <add>, %49, %cst_23 [1] : vector<8x8xf32> to vector<8xf32>
    %51 = vector.shape_cast %50 : vector<8xf32> to vector<8x1xf32>
    %52 = math.log %51 : vector<8x1xf32>
    %53 = arith.subf %52, %46 : vector<8x1xf32>
    %54 = vector.shape_cast %53 : vector<8x1xf32> to vector<1x8x1xf32>
    %cst_24 = arith.constant dense<0.000000e+00> : vector<1xf32>
    %55 = vector.multi_reduction <add>, %54, %cst_24 [1, 2] : vector<1x8x1xf32> to vector<1xf32>
    %56 = vector.shape_cast %55 : vector<1xf32> to vector<1x1x1xf32>
    %57 = vector.extract %56[0, 0, 0] : f32 from vector<1x1x1xf32>
    %cst_25 = arith.constant 1.250000e-01 : f32
    %58 = arith.mulf %57, %cst_25 : f32
    %c0_26 = arith.constant 0 : index
    %59 = memref.load %arg5[%c0_26] : memref<1xf32, #tpu.memory_space<smem>>
    memref.store %58, %arg5[%c0_26] : memref<1xf32, #tpu.memory_space<smem>>
    return
  }
}

</mosaic_0001>

<llo_original>
// kernel: mask_simclr_forward.1
$region0: #{mask_simclr_forward.1}
  #allocation0 [shape = 'u32[]', space=smem, size = 0x4, offset = 0x4, fixed_abs, tag = 'smem constant byte address 0x4 - core index']
  #allocation1 [shape = 'u32[144,128]{1,0:T(1,128)}', space=vmem, size = 0x12000, scoped, tag = 'internal scratch']
  %s0 = inlined_call_operand.hbm [shape: f32[8,64], index: 0, kind: input, shape index: {}]
  %s1 = inlined_call_operand.hbm [shape: f32[8,64], index: 1, kind: input, shape index: {}]
  %s2 = inlined_call_operand.hbm [shape: bf16[2,64,64], index: 2, kind: input, shape index: {}]
  %s3 = inlined_call_operand.vmem [shape: f32[2,64], index: 3, kind: input, shape index: {}]
  %s4 = inlined_call_operand.vmem [shape: f32[8,128], index: 4, kind: output, shape index: {0}]
  %s5 = inlined_call_operand.hbm [shape: f32[1], index: 5, kind: output, shape index: {1}]
  %6 = xla_tuple %s4, %s5
  %s7 = sld [smem:[#allocation0]]
  $region46: #{mask_simclr_forward.1} parent=0
    _
  %s9 = ssub.s32 1, %s7
  %s10 = scalar_select 0, %s9, %s7
  $region1: #{mask_simclr_forward.1} parent=0
    #allocation2 [shape = 'u8[4096]{0}', space=vmem, size = 0x1000, scoped, tag = 'input window, operand 0, single buffered']
    #allocation3 [shape = 's32[1]{0}', space=sflag, size = 0x4, scoped, tag = 'scoped memory for mask_simclr_forward.1']
    #allocation4 [shape = 's32[1]{0}', space=sflag, size = 0x4, scoped, tag = 'scoped memory for mask_simclr_forward.1']
    #allocation5 [shape = 'u8[4096]{0}', space=vmem, size = 0x1000, scoped, tag = 'input window, operand 1, single buffered']
    #allocation6 [shape = 's32[1]{0}', space=sflag, size = 0x4, scoped, tag = 'scoped memory for mask_simclr_forward.1']
    #allocation7 [shape = 'u8[32768]{0}', space=vmem, size = 0x8000, scoped, tag = 'input window, operand 2, single buffered']
    #allocation8 [shape = 'u8[512]{0}', space=smem, size = 0x200, scoped, tag = 'output window, operand 1, single buffered']
    %11 = vsyncpa [#allocation3], 0
    %12 = vsyncpa [#allocation6], 0
    %13 = vsyncpa [#allocation4], 0
    // Predicated region
    $region2: #{mask_simclr_forward.1} parent=1 // pred_check
      _
    $region3: #{mask_simclr_forward.1} parent=1 // pred_check_branch
      %15 = sbr.rel (0) target = $region5
    $region4: #{mask_simclr_forward.1} parent=1 // pred_region
      %s17 = ssub.s32 128, 128
      %18 = vsyncadd [#allocation3], %s17
      %s20 = sshll.u32 [#allocation2], 4
      %s21 = int_to_ptr.vmem [resolvable:$true] %s20
      %23 = dma.hbm_to_vmem [thread:$0]  %s0, 128, %s21, [#allocation3]
    $region5: #{mask_simclr_forward.1} parent=1 // pred_fallthru
      _
    // Predicated region
    $region6: #{mask_simclr_forward.1} parent=1 // pred_check
      _
    $region7: #{mask_simclr_forward.1} parent=1 // pred_check_branch
      %25 = sbr.rel (0) target = $region9
    $region8: #{mask_simclr_forward.1} parent=1 // pred_region
      %s27 = ssub.s32 128, 128
      %28 = vsyncadd [#allocation6], %s27
      %s30 = sshll.u32 [#allocation5], 4
      %s31 = int_to_ptr.vmem [resolvable:$true] %s30
      %33 = dma.hbm_to_vmem [thread:$0]  %s1, 128, %s31, [#allocation6]
    $region9: #{mask_simclr_forward.1} parent=1 // pred_fallthru
      _
    // Predicated region
    $region10: #{mask_simclr_forward.1} parent=1 // pred_check
      _
    $region11: #{mask_simclr_forward.1} parent=1 // pred_check_branch
      %35 = sbr.rel (0) target = $region13
    $region12: #{mask_simclr_forward.1} parent=1 // pred_region
      %s37 = ssub.s32 1024, 1024
      %38 = vsyncadd [#allocation6], %s37
      %s39 = sshll.u32 [#allocation7], 4
      %s40 = int_to_ptr.vmem [resolvable:$true] %s39
      %45 = dma.hbm_to_vmem [thread:$0]  %s2, 1024, %s40, [#allocation6], 64, 64, 4
    $region13: #{mask_simclr_forward.1} parent=1 // pred_fallthru
      _
    // Predicated region
    $region14: #{mask_simclr_forward.1} parent=1 // pred_check
      _
    $region15: #{mask_simclr_forward.1} parent=1 // pred_check_branch
      %47 = sbr.rel (0) target = $region17
    $region16: #{mask_simclr_forward.1} parent=1 // pred_region
      _
    $region17: #{mask_simclr_forward.1} parent=1 // pred_fallthru
      _
    // Predicated region
    $region18: #{mask_simclr_forward.1} parent=1 // pred_check
      _
    $region19: #{mask_simclr_forward.1} parent=1 // pred_check_branch
      %49 = sbr.rel (0) target = $region21
    $region20: #{mask_simclr_forward.1} parent=1 // pred_region
      %50 = dma.done [#allocation3], 128
    $region21: #{mask_simclr_forward.1} parent=1 // pred_fallthru
      _
    // Predicated region
    $region22: #{mask_simclr_forward.1} parent=1 // pred_check
      _
    $region23: #{mask_simclr_forward.1} parent=1 // pred_check_branch
      %52 = sbr.rel (0) target = $region25
    $region24: #{mask_simclr_forward.1} parent=1 // pred_region
      %53 = dma.done [#allocation6], 128
    $region25: #{mask_simclr_forward.1} parent=1 // pred_fallthru
      _
    // Predicated region
    $region26: #{mask_simclr_forward.1} parent=1 // pred_check
      _
    $region27: #{mask_simclr_forward.1} parent=1 // pred_check_branch
      %55 = sbr.rel (0) target = $region29
    $region28: #{mask_simclr_forward.1} parent=1 // pred_region
      %56 = dma.done [#allocation6], 1024
    $region29: #{mask_simclr_forward.1} parent=1 // pred_fallthru
      _
    %v58 = vld [vmem:[#allocation2] sm:$0xff]
    %v59 = vld [vmem:[#allocation5] sm:$0xff]
    %v60 = vpack.c.bf16 %v59, %v58
    %v61 = vld [vmem:[#allocation7] sm:$0xf]
    %v62 = vld [vmem:[#allocation7 + $0x4] sm:$0xf]
    %v63 = vld [vmem:[#allocation7 + $0x8] sm:$0xf]
    %v64 = vld [vmem:[#allocation7 + $0xc] sm:$0xf]
    %v65 = vld [vmem:[#allocation7 + $0x10] sm:$0xf]
    %v66 = vld [vmem:[#allocation7 + $0x14] sm:$0xf]
    %v67 = vld [vmem:[#allocation7 + $0x18] sm:$0xf]
    %v68 = vld [vmem:[#allocation7 + $0x1c] sm:$0xf]
    %v69 = vld [vmem:[%s3] sm:$0x1]
    %v70 = vlaneseq
    %v71 = vshrl.u32 %v70, 7
    %v72 = vsub.s32 0, %v71
    %v73 = vrot.slane %v69, %v72
    %v82 = vunpack.c.l.b16 %v61
    %v83 = vunpack.c.l.b16 %v62
    %v84 = vunpack.c.l.b16 %v63
    %v85 = vunpack.c.l.b16 %v64
    %v86 = vunpack.c.l.b16 %v65
    %v87 = vunpack.c.l.b16 %v66
    %v88 = vunpack.c.l.b16 %v67
    %v89 = vunpack.c.l.b16 %v68
    %v90 = vpack.c.b16 %v83, %v82
    %v91 = vpack.c.b16 %v85, %v84
    %v92 = vpack.c.b16 %v87, %v86
    %v93 = vpack.c.b16 %v89, %v88
    %vm98 = vcmask 523264
    %v100 = vsel %vm98, %v60, 0
    %102 = vmatprep.subr.bf16.mxu0 0
    %103 = vmatpush1.bf16.msra.mxu0 %v90
    %104 = vmatprep.subr.bf16.mxu0 0
    %105 = vmatpush1.bf16.msra.mxu0 %v91
    %106 = vmatprep.subr.bf16.mxu0 0
    %107 = vmatpush1.bf16.msra.mxu0 %v92
    %108 = vmatprep.subr.bf16.mxu0 0
    %109 = vmatpush1.bf16.msra.mxu0 %v93
    %110 = vmatprep.subr.bf16.mxu0 0
    %111 = vmatpush1.bf16.msra.mxu0 0
    %112 = vmatprep.subr.bf16.mxu0 0
    %113 = vmatpush1.bf16.msra.mxu0 0
    %114 = vmatprep.subr.bf16.mxu0 0
    %115 = vmatpush1.bf16.msra.mxu0 0
    %116 = vmatprep.subr.bf16.mxu0 0
    %117 = vmatpush1.bf16.msra.mxu0 0
    %118 = vmatprep.subr.bf16.mxu0 0
    %119 = vmatpush1.bf16.msra.mxu0 0
    %120 = vmatprep.subr.bf16.mxu0 0
    %121 = vmatpush1.bf16.msra.mxu0 0
    %122 = vmatprep.subr.bf16.mxu0 0
    %123 = vmatpush1.bf16.msra.mxu0 0
    %124 = vmatprep.subr.bf16.mxu0 0
    %125 = vmatpush1.bf16.msra.mxu0 0
    %126 = vmatprep.subr.bf16.mxu0 0
    %127 = vmatpush1.bf16.msra.mxu0 0
    %128 = vmatprep.subr.bf16.mxu0 0
    %129 = vmatpush1.bf16.msra.mxu0 0
    %130 = vmatprep.subr.bf16.mxu0 0
    %131 = vmatpush1.bf16.msra.mxu0 0
    %132 = vmatprep.subr.bf16.mxu0 0
    %133 = vmatpush1.bf16.msra.mxu0 0
    %134 = vmatprep.mubr.bf16.mxu0 0
    %135 = vmatmul.mubr.bf16.gmra.mrb[0].mxu0 %v100
    %v136 = vpop.f32.mrb[0].mxu0
    %v137 = vadd.f32 %v73, %v136
    %v138 = vpop.f32.mrb[0].mxu0
    %v139 = vpop.f32.mrb[0].mxu0
    %v140 = vadd.f32 %v73, %v139
    %v141 = vpop.f32.mrb[0].mxu0
    %142 = vdwg.mxu0
    %v143 = vmax.f32 %v137, 0.0
    %v144 = vmax.f32 %v140, 0.0
    %v145 = vpack.c.bf16 %v144, %v143
    %s146 = scalar_lea.vmem [#allocation7], 32
    %v147 = vld [vmem:[%s146] sm:$0xf]
    %v148 = vld [vmem:[%s146 + $0x4] sm:$0xf]
    %v149 = vld [vmem:[%s146 + $0x8] sm:$0xf]
    %v150 = vld [vmem:[%s146 + $0xc] sm:$0xf]
    %v151 = vld [vmem:[%s146 + $0x10] sm:$0xf]
    %v152 = vld [vmem:[%s146 + $0x14] sm:$0xf]
    %v153 = vld [vmem:[%s146 + $0x18] sm:$0xf]
    %v154 = vld [vmem:[%s146 + $0x1c] sm:$0xf]
    %v155 = vld [vmem:[%s3 + $0x1] sm:$0x1]
    %v156 = vlaneseq
    %v157 = vshrl.u32 %v156, 7
    %v158 = vsub.s32 0, %v157
    %v159 = vrot.slane %v155, %v158
    %v168 = vunpack.c.l.b16 %v147
    %v169 = vunpack.c.l.b16 %v148
    %v170 = vunpack.c.l.b16 %v149
    %v171 = vunpack.c.l.b16 %v150
    %v172 = vunpack.c.l.b16 %v151
    %v173 = vunpack.c.l.b16 %v152
    %v174 = vunpack.c.l.b16 %v153
    %v175 = vunpack.c.l.b16 %v154
    %v176 = vpack.c.b16 %v169, %v168
    %v177 = vpack.c.b16 %v171, %v170
    %v178 = vpack.c.b16 %v173, %v172
    %v179 = vpack.c.b16 %v175, %v174
    %v185 = vsel %vm98, %v145, 0
    %187 = vmatprep.subr.bf16.mxu0 0
    %188 = vmatpush1.bf16.msra.mxu0 %v176
    %189 = vmatprep.subr.bf16.mxu0 0
    %190 = vmatpush1.bf16.msra.mxu0 %v177
    %191 = vmatprep.subr.bf16.mxu0 0
    %192 = vmatpush1.bf16.msra.mxu0 %v178
    %193 = vmatprep.subr.bf16.mxu0 0
    %194 = vmatpush1.bf16.msra.mxu0 %v179
    %195 = vmatprep.subr.bf16.mxu0 0
    %196 = vmatpush1.bf16.msra.mxu0 0
    %197 = vmatprep.subr.bf16.mxu0 0
    %198 = vmatpush1.bf16.msra.mxu0 0
    %199 = vmatprep.subr.bf16.mxu0 0
    %200 = vmatpush1.bf16.msra.mxu0 0
    %201 = vmatprep.subr.bf16.mxu0 0
    %202 = vmatpush1.bf16.msra.mxu0 0
    %203 = vmatprep.subr.bf16.mxu0 0
    %204 = vmatpush1.bf16.msra.mxu0 0
    %205 = vmatprep.subr.bf16.mxu0 0
    %206 = vmatpush1.bf16.msra.mxu0 0
    %207 = vmatprep.subr.bf16.mxu0 0
    %208 = vmatpush1.bf16.msra.mxu0 0
    %209 = vmatprep.subr.bf16.mxu0 0
    %210 = vmatpush1.bf16.msra.mxu0 0
    %211 = vmatprep.subr.bf16.mxu0 0
    %212 = vmatpush1.bf16.msra.mxu0 0
    %213 = vmatprep.subr.bf16.mxu0 0
    %214 = vmatpush1.bf16.msra.mxu0 0
    %215 = vmatprep.subr.bf16.mxu0 0
    %216 = vmatpush1.bf16.msra.mxu0 0
    %217 = vmatprep.subr.bf16.mxu0 0
    %218 = vmatpush1.bf16.msra.mxu0 0
    %219 = vmatprep.mubr.bf16.mxu0 0
    %220 = vmatmul.mubr.bf16.gmra.mrb[0].mxu0 %v185
    %v221 = vpop.f32.mrb[0].mxu0
    %v222 = vadd.f32 %v159, %v221
    %v223 = vpop.f32.mrb[0].mxu0
    %v224 = vpop.f32.mrb[0].mxu0
    %v225 = vadd.f32 %v159, %v224
    %v226 = vpop.f32.mrb[0].mxu0
    %227 = vdwg.mxu0
    %229 = vrot.lane.b32.xlu0 %v225, 64
    %v230 = vpop.permute.xlu0 %229
    %v232 = vsel %vm98, %v222, %v230
    %233 = vst [vmem:[%s4] sm:$0xff] %v232
    %v234 = vmul.f32 %v222, %v222
    %v235 = vsel %vm98, %v234, 0.0
    %236 = vadd.xlane.f32.xlu0 %v235
    %v237 = vpop.xlane.xlu0 %236
    %v238 = vrsqrt.pop %v237
    %v239 = vmul.f32 %v238, 5.0
    %v240 = vmul.f32 %v222, %v239
    %v241 = vmul.f32 %v225, %v225
    %v242 = vsel %vm98, %v241, 0.0
    %243 = vadd.xlane.f32.xlu0 %v242
    %v244 = vpop.xlane.xlu0 %243
    %v245 = vrsqrt.pop %v244
    %v246 = vmul.f32 %v225, %v245
    %v247 = vpack.c.bf16 %v240, %v240
    %v248 = vpack.c.bf16 %v246, %v246
    %v250 = vsel %vm98, %v247, 0
    %v253 = vsel %vm98, %v248, 0
    %255 = vmatprep.subr.bf16.mxu0 0
    %256 = vmatpush1.bf16.xpose.msra.mxu0 %v253
    %257 = vmatprep.subr.bf16.mxu0 0
    %258 = vmatpush1.bf16.xpose.msra.mxu0 0
    %259 = vmatprep.subr.bf16.mxu0 0
    %260 = vmatpush1.bf16.xpose.msra.mxu0 0
    %261 = vmatprep.subr.bf16.mxu0 0
    %262 = vmatpush1.bf16.xpose.msra.mxu0 0
    %263 = vmatprep.subr.bf16.mxu0 0
    %264 = vmatpush1.bf16.xpose.msra.mxu0 0
    %265 = vmatprep.subr.bf16.mxu0 0
    %266 = vmatpush1.bf16.xpose.msra.mxu0 0
    %267 = vmatprep.subr.bf16.mxu0 0
    %268 = vmatpush1.bf16.xpose.msra.mxu0 0
    %269 = vmatprep.subr.bf16.mxu0 0
    %270 = vmatpush1.bf16.xpose.msra.mxu0 0
    %271 = vmatprep.subr.bf16.mxu0 0
    %272 = vmatpush1.bf16.xpose.msra.mxu0 0
    %273 = vmatprep.subr.bf16.mxu0 0
    %274 = vmatpush1.bf16.xpose.msra.mxu0 0
    %275 = vmatprep.subr.bf16.mxu0 0
    %276 = vmatpush1.bf16.xpose.msra.mxu0 0
    %277 = vmatprep.subr.bf16.mxu0 0
    %278 = vmatpush1.bf16.xpose.msra.mxu0 0
    %279 = vmatprep.subr.bf16.mxu0 0
    %280 = vmatpush1.bf16.xpose.msra.mxu0 0
    %281 = vmatprep.subr.bf16.mxu0 0
    %282 = vmatpush1.bf16.xpose.msra.mxu0 0
    %283 = vmatprep.subr.bf16.mxu0 0
    %284 = vmatpush1.bf16.xpose.msra.mxu0 0
    %285 = vmatprep.subr.bf16.mxu0 0
    %286 = vmatpush1.bf16.xpose.msra.mxu0 0
    %287 = vmatprep.mubr.bf16.mxu0 0
    %288 = vmatmul.mubr.bf16.gmra.mrb[0].mxu0 %v250
    %v289 = vpop.f32.mrb[0].mxu0
    %v290 = vadd.f32 0.0, %v289
    %v291 = vpop.f32.mrb[0].mxu0
    %v292 = vpop.f32.mrb[0].mxu0
    %v293 = vpop.f32.mrb[0].mxu0
    %294 = vdwg.mxu0
    %v295 = vlaneseq
    %v296 = vshrl.u32 %v295, 7
    %v297 = vlaneseq
    %v298 = vand.u32 %v297, 127
    %vm299 = vcmp.eq.s32.totalorder %v296, %v298
    %v300 = vsel %vm299, %v290, 0.0
    %vm301 = vcmask 64512
    %v302 = vsel %vm301, %v300, 0.0
    %303 = vadd.xlane.f32.xlu0 %v302
    %v304 = vpop.xlane.xlu0 %303
    %v305 = vmul.f32 %v290, 1.442695
    %v306 = vpow.pop %v305
    %v307 = vsel %vm299, 0.0, %v306
    %v308 = vsel %vm301, %v307, 0.0
    %309 = vadd.xlane.f32.xlu0 %v308
    %v310 = vpop.xlane.xlu0 %309
    %v311 = vlog2.pop %v310
    %v312 = vmul.f32 %v311, 0.6931472
    %v313 = vsub.f32 %v312, %v304
    %vm314 = vcmask 7168
    %v315 = vsel %vm314, %v313, 0.0
    %316 = vadd.xlane.f32.xlu0 %v315
    %v317 = vpop.xlane.xlu0 %316
    %v318 = vrot.slane %v317, 4
    %v319 = vadd.f32 %v317, %v318
    %v320 = vrot.slane %v319, 2
    %v321 = vadd.f32 %v319, %v320
    %v322 = vrot.slane %v321, 1
    %v323 = vadd.f32 %v321, %v322
    %s324 = vtos %v323
    %s325 = smul.f32 %s324, 0.125
    %s326 = scalar_lea.smem [#allocation8], 0
    %327 = sst [smem:[%s326]] %s325
    // Predicated region
    $region30: #{mask_simclr_forward.1} parent=1 // pred_check
      _
    $region31: #{mask_simclr_forward.1} parent=1 // pred_check_branch
      %329 = sbr.rel (0) target = $region33
    $region32: #{mask_simclr_forward.1} parent=1 // pred_region
      _
    $region33: #{mask_simclr_forward.1} parent=1 // pred_fallthru
      _
    // Predicated region
    $region34: #{mask_simclr_forward.1} parent=1 // pred_check
      _
    $region35: #{mask_simclr_forward.1} parent=1 // pred_check_branch
      %331 = sbr.rel (0) target = $region37
    $region36: #{mask_simclr_forward.1} parent=1 // pred_region
      %s333 = ssub.s32 16, 16
      %334 = vsyncadd [#allocation4], %s333
      %337 = dma.smem_to_hbm [#allocation8], 16, %s5, [#allocation4]
    $region37: #{mask_simclr_forward.1} parent=1 // pred_fallthru
      _
    // Predicated region
    $region38: #{mask_simclr_forward.1} parent=1 // pred_check
      _
    $region39: #{mask_simclr_forward.1} parent=1 // pred_check_branch
      %339 = sbr.rel (0) target = $region41
    $region40: #{mask_simclr_forward.1} parent=1 // pred_region
      _
    $region41: #{mask_simclr_forward.1} parent=1 // pred_fallthru
      _
    // Predicated region
    $region42: #{mask_simclr_forward.1} parent=1 // pred_check
      _
    $region43: #{mask_simclr_forward.1} parent=1 // pred_check_branch
      %341 = sbr.rel (0) target = $region45
    $region44: #{mask_simclr_forward.1} parent=1 // pred_region
      %342 = dma.done [#allocation4], 16
    $region45: #{mask_simclr_forward.1} parent=1 // pred_fallthru
      _
    %343 = sfence
    %344 = vsyncpa [#allocation3], 1
    %345 = vsyncpa [#allocation6], 1
    %346 = vsyncpa [#allocation4], 1

</llo_original>
